<compile_context>
chip_gen: v7x
topology: tpu7x:2x2x1
jax: 0.10.0
libtpu: 0.0.40
codegen_flags: <defaults>
</compile_context>

<pallas_src>
import functools
import random

import numpy as np
import jax
import jax.numpy as jnp
from jax.experimental import pallas as pl
from jax.experimental.pallas import tpu as pltpu


# Scoped-VMEM budget: tiles are sized to ~1 MiB per buffer, so double-buffered
# usage stays far below this on every generation (v7x: 64 MiB physical,
# v5e/v6e: 128 MiB physical / 32 MiB scoped default).  Raise the tile target
# and this limit together on v5e/v6e if bigger tiles are wanted.
_VMEM_LIMIT_BYTES = 32 * 1024 * 1024
_TARGET_BLOCK_BYTES = 1 << 20   # ~1 MiB per input buffer per grid step


def _divisor_block(extent: int, quantum: int, max_block: int) -> int:
    """Largest b <= max_block with extent % b == 0 and b % quantum == 0.

    Falls back to the full extent (always a legal, full-dim block) if no
    aligned divisor fits."""
    best = None
    b = quantum
    limit = min(extent, max_block)
    while b <= limit:
        if extent % b == 0:
            best = b
        b += quantum
    return best if best is not None else extent


# ----------------------------------------------------------------------------
# Gaussian blur branch
# ----------------------------------------------------------------------------
def _gaussian_kernel1d(kernel_size: int) -> np.ndarray:
    sigma = 0.3 * ((kernel_size - 1) * 0.5 - 1) + 0.8
    half = (kernel_size - 1) * 0.5
    x = np.linspace(-half, half, kernel_size)
    pdf = np.exp(-0.5 * (x / sigma) ** 2)
    return (pdf / pdf.sum()).astype(np.float32)


def _blur_kernel(x_ref, o_ref, *, weights, r):
    # x_ref / o_ref: (B, H, W) block of unpadded channels.
    B, H, W = x_ref.shape
    K = 2 * r + 1

    # ---- vertical (sublane) pass: each tap is a slice read from the ref ----
    acc = jnp.zeros((B, H, W), jnp.float32)
    for t in range(K):
        d = t - r
        w = jnp.float32(weights[t])
        if d == 0:
            tap = x_ref[...]
        elif d > 0:
            parts = [x_ref[:, d:H, :]]
            # reflected tail rows: x[H-2], x[H-3], ..., x[H-1-d]
            for j in range(d):
                parts.append(x_ref[:, H - 2 - j:H - 1 - j, :])
            tap = jnp.concatenate(parts, axis=1)
        else:
            dd = -d
            parts = []
            # reflected head rows: x[dd], x[dd-1], ..., x[1]
            for j in range(dd):
                parts.append(x_ref[:, dd - j:dd - j + 1, :])
            parts.append(x_ref[:, 0:H - dd, :])
            tap = jnp.concatenate(parts, axis=1)
        acc = acc + w * tap.astype(jnp.float32)

    # ---- horizontal (lane) pass: reflect-pad once, then K static slices ----
    left = [acc[:, :, j:j + 1] for j in range(r, 0, -1)]          # cols r..1
    right = [acc[:, :, W - 2 - j:W - 1 - j] for j in range(r)]    # cols W-2..W-1-r
    acc_pad = jnp.concatenate(left + [acc] + right, axis=2)
    out = jnp.zeros((B, H, W), jnp.float32)
    for t in range(K):
        out = out + jnp.float32(weights[t]) * acc_pad[:, :, t:t + W]

    # NOTE(v5e): for W < 128 this store is a masked (sub-lane-width) store;
    # packing channels/rows into a lane-dense output slab would need an
    # in-kernel sublane->lane reshape, skipped here for lowering safety.
    o_ref[...] = out.astype(o_ref.dtype)


def gaussian_blur(img, kernel_size: int):
    N, C, H, W = img.shape
    K = int(kernel_size)
    assert K % 2 == 1 and K > 0, "kernel_size must be a positive odd integer"
    r = K // 2
    assert r < H and r < W, "reflect padding needs kernel radius < spatial size"
    weights = tuple(float(w) for w in _gaussian_kernel1d(K))

    NC = N * C
    x3 = img.reshape(NC, H, W)
    itemsize = np.dtype(img.dtype).itemsize
    chan_bytes = H * W * itemsize
    # Batch channels per grid step: ~1 MiB input tile, but keep >=2 grid steps
    # when possible so v7x's two TensorCores both get work.
    max_chan = max(1, min(_TARGET_BLOCK_BYTES // max(1, chan_bytes),
                          NC // 2 if NC >= 2 else NC))
    B = _divisor_block(NC, 1, max_chan)

    kern = functools.partial(_blur_kernel, weights=weights, r=r)
    out3 = pl.pallas_call(
        kern,
        out_shape=jax.ShapeDtypeStruct((NC, H, W), img.dtype),
        grid_spec=pltpu.PrefetchScalarGridSpec(
            num_scalar_prefetch=0,
            grid=(NC // B,),
            in_specs=[pl.BlockSpec((B, H, W), lambda i: (i, 0, 0))],
            out_specs=pl.BlockSpec((B, H, W), lambda i: (i, 0, 0)),
        ),
        compiler_params=pltpu.CompilerParams(
            dimension_semantics=("parallel",),
            vmem_limit_bytes=_VMEM_LIMIT_BYTES),
    )(x3)
    return out3.reshape(N, C, H, W)


# ----------------------------------------------------------------------------
# Noise branch: clamp(img + (rand_like(img) - 0.5) * 2 * amp, 0, 1)
# ----------------------------------------------------------------------------
def _noise_kernel(x_ref, bits_ref, o_ref, *, amp):
    bits = bits_ref[...]
    hi = jax.lax.shift_right_logical(bits, jnp.uint32(8))       # top 24 bits
    u = hi.astype(jnp.float32) * jnp.float32(1.0 / (1 << 24))   # uniform [0,1)
    noise = (u - jnp.float32(0.5)) * jnp.float32(2.0 * amp)
    y = x_ref[...].astype(jnp.float32) + noise
    o_ref[...] = jnp.clip(y, 0.0, 1.0).astype(o_ref.dtype)


def add_uniform_noise(img, noise_amplitude: float, key):
    N, C, H, W = img.shape
    rows, cols = N * C, H * W
    itemsize = np.dtype(img.dtype).itemsize
    x2 = img.reshape(rows, cols)
    # Uniform bits generated on-device with jax.random and streamed in
    # (TPU hardware PRNG primitives have no CPU/interpret lowering).
    bits = jax.random.bits(key, (rows, cols), dtype=jnp.uint32)

    # Row block: full rows unless a single 128-lane strip would blow the budget
    # (row block must then be a multiple of 8 to satisfy the (8,128) rule).
    if rows * 128 * itemsize > _TARGET_BLOCK_BYTES:
        Rb = _divisor_block(rows, 8, max(8, _TARGET_BLOCK_BYTES // (128 * itemsize)))
    else:
        Rb = rows
    # Lane block: multiple of 128 dividing cols, ~1 MiB per buffer, and >=2
    # lane steps when possible (v7x megacore / pipelining).
    max_lane = max(128, _TARGET_BLOCK_BYTES // max(1, Rb * itemsize))
    if cols >= 256:
        max_lane = min(max_lane, cols // 2)
    Lb = _divisor_block(cols, 128, max_lane)

    kern = functools.partial(_noise_kernel, amp=float(noise_amplitude))
    out2 = pl.pallas_call(
        kern,
        out_shape=jax.ShapeDtypeStruct((rows, cols), img.dtype),
        grid_spec=pltpu.PrefetchScalarGridSpec(
            num_scalar_prefetch=0,
            grid=(rows // Rb, cols // Lb),
            in_specs=[pl.BlockSpec((Rb, Lb), lambda i, j: (i, j)),
                      pl.BlockSpec((Rb, Lb), lambda i, j: (i, j))],
            out_specs=pl.BlockSpec((Rb, Lb), lambda i, j: (i, j)),
        ),
        compiler_params=pltpu.CompilerParams(
            dimension_semantics=("parallel", "parallel"),
            vmem_limit_bytes=_VMEM_LIMIT_BYTES),
    )(x2, bits)
    return out2.reshape(N, C, H, W)


# ----------------------------------------------------------------------------
# Module-equivalent wrapper
# ----------------------------------------------------------------------------
class RandomDistortion:
    def __init__(self, p: float, kernel_size: int, noise_amplitude: float):
        self.p = p
        self.kernel_size = kernel_size
        self.noise_amplitude = noise_amplitude

    def __call__(self, img, key):
        # Host-side branch selection, exactly mirroring `random.random() < p`
        # in the PyTorch module; no device->host sync here.
        if random.random() < self.p:
            return gaussian_blur(img, self.kernel_size)
        else:
            return add_uniform_noise(img, self.noise_amplitude, key)


# ----------------------------------------------------------------------------
# Pure-JAX reference for the blur (for a correctness spot-check)
# ----------------------------------------------------------------------------
def _blur_reference(img, K):
    r = K // 2
    w = _gaussian_kernel1d(K)
    H, W = img.shape[2], img.shape[3]
    xp = jnp.pad(img, ((0, 0), (0, 0), (r, r), (r, r)), mode="reflect")
    acc = sum(float(w[i]) * xp[:, :, i:i + H, :] for i in range(K))
    out = sum(float(w[j]) * acc[:, :, :, j:j + W] for j in range(K))
    return out.astype(img.dtype)


if __name__ == "__main__":
    key = jax.random.PRNGKey(0)
    k_img, k_noise = jax.random.split(key)
    img = jax.random.uniform(k_img, (2, 4, 16, 16), dtype=jnp.float32)  # NCHW

    random.seed(0)
    module = RandomDistortion(p=0.5, kernel_size=3, noise_amplitude=0.1)

    # module-equivalent forward (random branch, host-side like PyTorch)
    out = module(img, k_noise)

    # exercise both kernel paths explicitly as well
    out_blur = gaussian_blur(img, 3)
    out_noise = add_uniform_noise(img, 0.1, k_noise)

    jax.block_until_ready((out, out_blur, out_noise))

    assert out.shape == img.shape and out.dtype == img.dtype
    assert out_blur.shape == img.shape

    # blur correctness vs pure-JAX reference (reflect-padded separable conv)
    ref_blur = _blur_reference(img, 3)
    assert bool(jnp.allclose(out_blur, ref_blur, atol=1e-5, rtol=1e-5))

    # noise correctness vs recomputed expectation with the same bits
    bits = jax.random.bits(k_noise, (2 * 4, 16 * 16), dtype=jnp.uint32)
    u = (bits >> 8).astype(jnp.float32) * (1.0 / (1 << 24))
    exp_noise = jnp.clip(img.reshape(8, 256) + (u - 0.5) * 0.2, 0.0, 1.0)
    assert bool(jnp.allclose(out_noise, exp_noise.reshape(img.shape), atol=1e-6))
    assert float(jnp.min(out_noise)) >= 0.0 and float(jnp.max(out_noise)) <= 1.0

    print("KERNEL_OK")
</pallas_src>

<mosaic_0001>
module attributes {stable_mosaic.version = 11 : i64} {
  func.func @_noise_kernel(%arg0: i32, %arg1: i32, %arg2: memref<8x128xf32, #tpu.memory_space<vmem>>, %arg3: memref<8x128xi32, #tpu.memory_space<vmem>>, %arg4: memref<8x128xf32, #tpu.memory_space<vmem>>) attributes {dimension_semantics = [#tpu.dimension_semantics<parallel>, #tpu.dimension_semantics<parallel>], iteration_bounds = array<i64: 1, 2>, scalar_prefetch = 0 : i64, scratch_operands = 0 : i64, tpu.core_type = #tpu.core_type<tc>, window_params = [{transform_indices = @transform_0, window_bounds = array<i64: 8, 128>}, {transform_indices = @transform_1, window_bounds = array<i64: 8, 128>}, {transform_indices = @transform_2, window_bounds = array<i64: 8, 128>}]} {
    %c0 = arith.constant 0 : index
    %c0_0 = arith.constant 0 : index
    %0 = vector.load %arg3[%c0, %c0_0] : memref<8x128xi32, #tpu.memory_space<vmem>>, vector<8x128xi32>
    %c8_i32 = arith.constant 8 : i32
    %1 = vector.broadcast %c8_i32 : i32 to vector<8x128xi32>
    %2 = arith.shrui %0, %1 : vector<8x128xi32>
    %3 = arith.uitofp %2 : vector<8x128xi32> to vector<8x128xf32>
    %cst = arith.constant 5.96046448E-8 : f32
    %4 = vector.broadcast %cst : f32 to vector<8x128xf32>
    %5 = arith.mulf %3, %4 : vector<8x128xf32>
    %cst_1 = arith.constant 5.000000e-01 : f32
    %6 = vector.broadcast %cst_1 : f32 to vector<8x128xf32>
    %7 = arith.subf %5, %6 : vector<8x128xf32>
    %cst_2 = arith.constant 2.000000e-01 : f32
    %8 = vector.broadcast %cst_2 : f32 to vector<8x128xf32>
    %9 = arith.mulf %7, %8 : vector<8x128xf32>
    %c0_3 = arith.constant 0 : index
    %c0_4 = arith.constant 0 : index
    %10 = vector.load %arg2[%c0_3, %c0_4] : memref<8x128xf32, #tpu.memory_space<vmem>>, vector<8x128xf32>
    %11 = arith.addf %10, %9 : vector<8x128xf32>
    %cst_5 = arith.constant 0.000000e+00 : f32
    %cst_6 = arith.constant 1.000000e+00 : f32
    %12 = vector.broadcast %cst_5 : f32 to vector<8x128xf32>
    %13 = arith.maximumf %12, %11 : vector<8x128xf32>
    %14 = vector.broadcast %cst_6 : f32 to vector<8x128xf32>
    %15 = arith.minimumf %14, %13 : vector<8x128xf32>
    %c0_7 = arith.constant 0 : index
    %c0_8 = arith.constant 0 : index
    %16 = vector.load %arg4[%c0_7, %c0_8] : memref<8x128xf32, #tpu.memory_space<vmem>>, vector<8x128xf32>
    tpu.vector_store %arg4[%c0_7, %c0_8], %15 {strides = array<i32>} : memref<8x128xf32, #tpu.memory_space<vmem>>, vector<8x128xf32>,
    return
  }
  func.func @transform_0(%arg0: i32, %arg1: i32) -> (i32, i32) {
    %c0_i32 = arith.constant 0 : i32
    return %arg0, %arg1 : i32, i32
  }
  func.func @transform_1(%arg0: i32, %arg1: i32) -> (i32, i32) {
    %c0_i32 = arith.constant 0 : i32
    return %arg0, %arg1 : i32, i32
  }
  func.func @transform_2(%arg0: i32, %arg1: i32) -> (i32, i32) {
    %c0_i32 = arith.constant 0 : i32
    return %arg0, %arg1 : i32, i32
  }
}

</mosaic_0001>

<llo_original>
// kernel: tpu_custom_call.1
$region0: #{tpu_custom_call.1}
  #allocation0 [shape = 'u32[]', space=smem, size = 0x4, offset = 0x4, fixed_abs, tag = 'smem constant byte address 0x4 - core index']
  #allocation1 [shape = 'u32[144,128]{1,0:T(1,128)}', space=vmem, size = 0x12000, scoped, tag = 'internal scratch']
  %s0 = inlined_call_operand.hbm [shape: f32[8,256], index: 0, kind: input, shape index: {}]
  %s1 = inlined_call_operand.hbm [shape: u32[8,256], index: 1, kind: input, shape index: {}]
  %s2 = inlined_call_operand.hbm [shape: f32[8,256], index: 2, kind: output, shape index: {}]
  %s3 = sld [smem:[#allocation0]]
  $region49: #{tpu_custom_call.1} parent=0
    _
  %s5 = ssub.s32 1, %s3
  %s6 = scalar_select 0, %s5, %s3
  $region1: #{tpu_custom_call.1} parent=0
    #allocation2 [shape = 'u8[8192]{0}', space=vmem, size = 0x2000, scoped, tag = 'input window, operand 0']
    #allocation3 [shape = 's32[2]{0}', space=sflag, size = 0x8, scoped, tag = 'scoped memory for tpu_custom_call.1']
    #allocation4 [shape = 's32[2]{0}', space=sflag, size = 0x8, scoped, tag = 'scoped memory for tpu_custom_call.1']
    #allocation5 [shape = 'u8[8192]{0}', space=vmem, size = 0x2000, scoped, tag = 'input window, operand 1']
    #allocation6 [shape = 's32[2]{0}', space=sflag, size = 0x8, scoped, tag = 'scoped memory for tpu_custom_call.1']
    #allocation7 [shape = 'u8[8192]{0}', space=vmem, size = 0x2000, scoped, tag = 'output window, operand 0']
    %7 = vsyncpa [#allocation3], 0
    %s8 = scalar_lea.sflag [#allocation3], 1
    %9 = vsyncpa %s8, 0
    %10 = vsyncpa [#allocation6], 0
    %s11 = scalar_lea.sflag [#allocation6], 1
    %12 = vsyncpa %s11, 0
    %13 = vsyncpa [#allocation4], 0
    %s14 = scalar_lea.sflag [#allocation4], 1
    %15 = vsyncpa %s14, 0
    loop: start=0, step=1, limit=4
    $region2: #{tpu_custom_call.1} parent=1 // loop_pre_header
      _
    $region3: #{tpu_custom_call.1} parent=1 // loop_header
      %s17 = sphi 0, %s21
      %p18 = scmp.ge.s32.totalorder %s17, 4
      %s24 = sphi 0, %s36
      %s25 = sphi 0, %s32
      %s26 = sphi 0, %s24
      %s27 = sphi 0, %s25
      %s28 = sphi 0, %s26
      %s29 = sphi 0, %s27
      %s41 = sphi 0, %s43
      %s44 = sphi 0, %s41
      %s45 = sphi 0, %s44
      %s61 = sphi 0, %s45
      %s69 = sphi 0, %s71
      %s72 = sphi 0, %s69
      %s73 = sphi 0, %s72
      %s89 = sphi 0, %s73
      %s97 = sphi 0, %s99
      %s100 = sphi 0, %s97
      %s101 = sphi 0, %s100
      %s117 = sphi 0, %s101
    $region4: #{tpu_custom_call.1} parent=1 // loop_header_branch
      %20 = sbr.rel (%p18) target = $region8
    $region5: #{tpu_custom_call.1} parent=1 // loop_body
      %s22 = ssub.s32 %s17, 1
      %s23 = ssub.s32 %s17, 2
      %s30 = sadd.s32 1, %s25
      %p31 = scmp.ge.s32.totalorder %s30, 2
      %s32 = scalar_select %p31, 0, %s30
      %s33 = sadd.s32 1, %s24
      %s34 = scalar_select %p31, %s33, %s24
      %p35 = scmp.ge.s32.totalorder %s34, 1
      %s36 = scalar_select %p35, 0, %s34
      %s37 = ssub.s32 %s24, %s36
      %s38 = ssub.s32 %s25, %s32
      %s39 = sor.u32 %s37, %s38
      %p40 = scmp.eq.s32.totalorder %s39, 0
      %s42 = sadd.s32 %s41, 1
      %s43 = scalar_select %p40, %s41, %s42
      %p46 = pneg %p40
      %p47 = scmp.eq.s32.totalorder %s17, 1
      %p48 = por %p46, %p47
      %p49 = scmp.ne.s32.totalorder %s41, %s44
      %p50 = scmp.eq.s32.totalorder %s17, 0
      %p51 = por %p49, %p50
      %p52 = scmp.ne.s32.totalorder %s41, %s44
      %p53 = scmp.eq.s32.totalorder %s22, 1
      %p54 = por %p52, %p53
      %p55 = scmp.ne.s32.totalorder %s44, %s45
      %p56 = scmp.eq.s32.totalorder %s22, 0
      %p57 = por %p55, %p56
      %p58 = scmp.ne.s32.totalorder %s44, %s45
      %p59 = scmp.eq.s32.totalorder %s23, 1
      %p60 = por %p58, %p59
      %p62 = scmp.ne.s32.totalorder %s45, %s61
      %p63 = scmp.eq.s32.totalorder %s23, 0
      %p64 = por %p62, %p63
      %s65 = ssub.s32 %s24, %s36
      %s66 = ssub.s32 %s25, %s32
      %s67 = sor.u32 %s65, %s66
      %p68 = scmp.eq.s32.totalorder %s67, 0
      %s70 = sadd.s32 %s69, 1
      %s71 = scalar_select %p68, %s69, %s70
      %p74 = pneg %p68
      %p75 = scmp.eq.s32.totalorder %s17, 1
      %p76 = por %p74, %p75
      %p77 = scmp.ne.s32.totalorder %s69, %s72
      %p78 = scmp.eq.s32.totalorder %s17, 0
      %p79 = por %p77, %p78
      %p80 = scmp.ne.s32.totalorder %s69, %s72
      %p81 = scmp.eq.s32.totalorder %s22, 1
      %p82 = por %p80, %p81
      %p83 = scmp.ne.s32.totalorder %s72, %s73
      %p84 = scmp.eq.s32.totalorder %s22, 0
      %p85 = por %p83, %p84
      %p86 = scmp.ne.s32.totalorder %s72, %s73
      %p87 = scmp.eq.s32.totalorder %s23, 1
      %p88 = por %p86, %p87
      %p90 = scmp.ne.s32.totalorder %s73, %s89
      %p91 = scmp.eq.s32.totalorder %s23, 0
      %p92 = por %p90, %p91
      %s93 = ssub.s32 %s24, %s36
      %s94 = ssub.s32 %s25, %s32
      %s95 = sor.u32 %s93, %s94
      %p96 = scmp.eq.s32.totalorder %s95, 0
      %s98 = sadd.s32 %s97, 1
      %s99 = scalar_select %p96, %s97, %s98
      %p102 = pneg %p96
      %p103 = scmp.eq.s32.totalorder %s17, 1
      %p104 = por %p102, %p103
      %p105 = scmp.ne.s32.totalorder %s97, %s100
      %p106 = scmp.eq.s32.totalorder %s17, 0
      %p107 = por %p105, %p106
      %p108 = scmp.ne.s32.totalorder %s97, %s100
      %p109 = scmp.eq.s32.totalorder %s22, 1
      %p110 = por %p108, %p109
      %p111 = scmp.ne.s32.totalorder %s100, %s101
      %p112 = scmp.eq.s32.totalorder %s22, 0
      %p113 = por %p111, %p112
      %p114 = scmp.ne.s32.totalorder %s100, %s101
      %p115 = scmp.eq.s32.totalorder %s23, 1
      %p116 = por %p114, %p115
      %p118 = scmp.ne.s32.totalorder %s101, %s117
      %p119 = scmp.eq.s32.totalorder %s23, 0
      %p120 = por %p118, %p119
      %p121 = scmp.le.s32.totalorder 1, %s17
      %p122 = scmp.lt.s32.totalorder %s17, 3
      %p123 = pnand %p121, %p122
      %p124 = pneg %p123
      // Predicated region
      $region9: #{tpu_custom_call.1} parent=5 // pred_check
        _
      $region10: #{tpu_custom_call.1} parent=5 // pred_check_branch
        %126 = sbr.rel (%p123) target = $region12
      $region11: #{tpu_custom_call.1} parent=5 // pred_region
        %s127 = ssub.s32 %s17, 1
      $region12: #{tpu_custom_call.1} parent=5 // pred_fallthru
        _
      %p128 = scmp.lt.s32.totalorder %s17, 2
      // Predicated region
      $region13: #{tpu_custom_call.1} parent=5 // pred_check
        %p129 = pneg %p128
      $region14: #{tpu_custom_call.1} parent=5 // pred_check_branch
        %131 = sbr.rel (%p129) target = $region16
      $region15: #{tpu_custom_call.1} parent=5 // pred_region
        // Predicated region
        $region17: #{tpu_custom_call.1} parent=15 // pred_check
          %p132 = pneg %p51
        $region18: #{tpu_custom_call.1} parent=15 // pred_check_branch
          %134 = sbr.rel (%p132) target = $region20
        $region19: #{tpu_custom_call.1} parent=15 // pred_region
          %s135 = sand.u32 %s41, 1
          %s136 = scalar_lea.sflag [#allocation3], %s135
          %s137 = sand.u32 %s41, 1
          %s138 = smul.addr %s137, 8
          %s139 = scalar_lea.vmem [#allocation2], %s138
          %s141 = ssub.s32 128, 128
          %142 = vsyncadd %s136, %s141
          %s143 = smul.addr %s24, 2
          %s144 = sadd.s32 %s25, %s143
          %s145 = smul.addr %s144, 128
          %s146 = scalar_lea.hbm %s0, %s145
          %s148 = sshll.u32 %s139, 4
          %s149 = int_to_ptr.vmem [resolvable:$true] %s148
          %151 = dma.hbm_to_vmem [thread:$0]  %s146, 128, %s149, %s136
        $region20: #{tpu_custom_call.1} parent=15 // pred_fallthru
          _
        // Predicated region
        $region21: #{tpu_custom_call.1} parent=15 // pred_check
          %p152 = pneg %p79
        $region22: #{tpu_custom_call.1} parent=15 // pred_check_branch
          %154 = sbr.rel (%p152) target = $region24
        $region23: #{tpu_custom_call.1} parent=15 // pred_region
          %s155 = sand.u32 %s69, 1
          %s156 = scalar_lea.sflag [#allocation6], %s155
          %s157 = sand.u32 %s69, 1
          %s158 = smul.addr %s157, 8
          %s159 = scalar_lea.vmem [#allocation5], %s158
          %s161 = ssub.s32 128, 128
          %162 = vsyncadd %s156, %s161
          %s163 = smul.addr %s24, 2
          %s164 = sadd.s32 %s25, %s163
          %s165 = smul.addr %s164, 128
          %s166 = scalar_lea.hbm %s1, %s165
          %s168 = sshll.u32 %s159, 4
          %s169 = int_to_ptr.vmem [resolvable:$true] %s168
          %171 = dma.hbm_to_vmem [thread:$0]  %s166, 128, %s169, %s156
        $region24: #{tpu_custom_call.1} parent=15 // pred_fallthru
          _
      $region16: #{tpu_custom_call.1} parent=5 // pred_fallthru
        _
      %p172 = scmp.le.s32.totalorder 1, %s17
      %p173 = scmp.lt.s32.totalorder %s17, 3
      %p174 = pnand %p172, %p173
      %p175 = pneg %p174
      // Predicated region
      $region25: #{tpu_custom_call.1} parent=5 // pred_check
        _
      $region26: #{tpu_custom_call.1} parent=5 // pred_check_branch
        %177 = sbr.rel (%p174) target = $region28
      $region27: #{tpu_custom_call.1} parent=5 // pred_region
        %s178 = ssub.s32 %s17, 1
        %s179 = sand.u32 %s44, 1
        %s180 = scalar_lea.sflag [#allocation3], %s179
        %s181 = sand.u32 %s44, 1
        %s182 = smul.addr %s181, 8
        %s183 = scalar_lea.vmem [#allocation2], %s182
        // Predicated region
        $region29: #{tpu_custom_call.1} parent=27 // pred_check
          %p184 = pneg %p57
        $region30: #{tpu_custom_call.1} parent=27 // pred_check_branch
          %186 = sbr.rel (%p184) target = $region32
        $region31: #{tpu_custom_call.1} parent=27 // pred_region
          %187 = dma.done %s180, 128
        $region32: #{tpu_custom_call.1} parent=27 // pred_fallthru
          _
        %s188 = sand.u32 %s72, 1
        %s189 = scalar_lea.sflag [#allocation6], %s188
        %s190 = sand.u32 %s72, 1
        %s191 = smul.addr %s190, 8
        %s192 = scalar_lea.vmem [#allocation5], %s191
        // Predicated region
        $region33: #{tpu_custom_call.1} parent=27 // pred_check
          %p193 = pneg %p85
        $region34: #{tpu_custom_call.1} parent=27 // pred_check_branch
          %195 = sbr.rel (%p193) target = $region36
        $region35: #{tpu_custom_call.1} parent=27 // pred_region
          %196 = dma.done %s189, 128
        $region36: #{tpu_custom_call.1} parent=27 // pred_fallthru
          _
        %s197 = sand.u32 %s44, 1
        %s198 = scalar_lea.sflag [#allocation3], %s197
        %s199 = sand.u32 %s44, 1
        %s200 = smul.addr %s199, 8
        %s201 = scalar_lea.vmem [#allocation2], %s200
        %p202 = pneg %p57
        %p203 = pneg %p54
        %s204 = sand.u32 %s72, 1
        %s205 = scalar_lea.sflag [#allocation6], %s204
        %s206 = sand.u32 %s72, 1
        %s207 = smul.addr %s206, 8
        %s208 = scalar_lea.vmem [#allocation5], %s207
        %p209 = pneg %p85
        %p210 = pneg %p82
        %p211 = pneg %p113
        %p212 = pneg %p110
        %s213 = sand.u32 %s100, 1
        %s214 = scalar_lea.sflag [#allocation4], %s213
        %s215 = sand.u32 %s100, 1
        %s216 = smul.addr %s215, 8
        %s217 = scalar_lea.vmem [#allocation7], %s216
        %v218 = vld [vmem:[%s192] sm:$0xff]
        %v219 = vshrl.u32 %v218, 8
        %v220 = vshrl.u32 %v219, 16
        %v221 = vand.u32 %v219, 65535
        %v222 = vcvt.s32.f32 %v220
        %v223 = vmul.f32 %v222, 65536.0
        %v224 = vcvt.s32.f32 %v221
        %v225 = vadd.f32 %v223, %v224
        %v226 = vmul.f32 %v225, 5.9604645e-08
        %v227 = vsub.f32 %v226, 0.5
        %v228 = vmul.f32 %v227, 0.2
        %v229 = vld [vmem:[%s183] sm:$0xff]
        %v230 = vadd.f32 %v229, %v228
        %v231 = vmax.f32 %v230, 0.0
        %v232 = vmin.f32 %v231, 1.0
        %233 = vst [vmem:[%s217] sm:$0xff] %v232
        %s234 = sand.u32 %s100, 1
        %s235 = scalar_lea.sflag [#allocation4], %s234
        %s236 = sand.u32 %s100, 1
        %s237 = smul.addr %s236, 8
        %s238 = scalar_lea.vmem [#allocation7], %s237
        // Predicated region
        $region37: #{tpu_custom_call.1} parent=27 // pred_check
          %p239 = pneg %p110
        $region38: #{tpu_custom_call.1} parent=27 // pred_check_branch
          %241 = sbr.rel (%p239) target = $region40
        $region39: #{tpu_custom_call.1} parent=27 // pred_region
          %s243 = ssub.s32 128, 128
          %244 = vsyncadd %s235, %s243
          %s245 = smul.addr %s26, 2
          %s246 = sadd.s32 %s27, %s245
          %s247 = smul.addr %s246, 128
          %s248 = scalar_lea.hbm %s2, %s247
          %s250 = sshll.u32 %s238, 4
          %s251 = int_to_ptr.vmem [resolvable:$true] %s250
          %253 = dma.vmem_to_hbm [thread:$0]  %s251, 128, %s248, %s235
        $region40: #{tpu_custom_call.1} parent=27 // pred_fallthru
          _
      $region28: #{tpu_custom_call.1} parent=5 // pred_fallthru
        _
      %p254 = scmp.le.s32.totalorder 2, %s17
      // Predicated region
      $region41: #{tpu_custom_call.1} parent=5 // pred_check
        %p255 = pneg %p254
      $region42: #{tpu_custom_call.1} parent=5 // pred_check_branch
        %257 = sbr.rel (%p255) target = $region44
      $region43: #{tpu_custom_call.1} parent=5 // pred_region
        %s258 = ssub.s32 %s17, 2
        // Predicated region
        $region45: #{tpu_custom_call.1} parent=43 // pred_check
          %p259 = pneg %p116
        $region46: #{tpu_custom_call.1} parent=43 // pred_check_branch
          %261 = sbr.rel (%p259) target = $region48
        $region47: #{tpu_custom_call.1} parent=43 // pred_region
          %s262 = sand.u32 %s101, 1
          %s263 = scalar_lea.sflag [#allocation4], %s262
          %s264 = sand.u32 %s101, 1
          %s265 = smul.addr %s264, 8
          %s266 = scalar_lea.vmem [#allocation7], %s265
          %267 = dma.done %s263, 128
        $region48: #{tpu_custom_call.1} parent=43 // pred_fallthru
          _
      $region44: #{tpu_custom_call.1} parent=5 // pred_fallthru
        _
    $region6: #{tpu_custom_call.1} parent=1 // loop_footer
      %s21 = sadd.s32 1, %s17
    $region7: #{tpu_custom_call.1} parent=1 // loop_footer_branch
      %16 = sbr.rel target = $region3
    $region8: #{tpu_custom_call.1} parent=1 // loop_exit
      _
    %268 = vsyncpa [#allocation3], 1
    %s269 = scalar_lea.sflag [#allocation3], 1
    %270 = vsyncpa %s269, 1
    %271 = vsyncpa [#allocation6], 1
    %s272 = scalar_lea.sflag [#allocation6], 1
    %273 = vsyncpa %s272, 1
    %274 = vsyncpa [#allocation4], 1
    %s275 = scalar_lea.sflag [#allocation4], 1
    %276 = vsyncpa %s275, 1

</llo_original>
